<compile_context>
chip_gen: v5e
topology: v5e:2x2
jax: 0.10.0
libtpu: 0.0.40
codegen_flags: <defaults>
</compile_context>

<pallas_src>
import math

import jax
import jax.numpy as jnp
from jax import lax
from jax.experimental import pallas as pl
from jax.experimental.pallas import tpu as pltpu


def _pick_tile(s, target=512):
    """Largest power-of-two tile <= target that divides s (falls back to s)."""
    t = math.gcd(s, target)
    if t < s and t % 8 != 0:
        return s  # can't satisfy the (8,128) sublane rule with a partial tile
    return t


def attention_head(query, key, value, params, *,
                   q_tile=None, kv_tile=None, use_bf16_matmul=False):
    """query/key/value: [B, S, dim_in] float32. Returns [B, S, dim_k]."""
    B, S, Din = query.shape
    wq, bq = params["wq"], params["bq"]   # (Din, Dq), (1, Dq)
    wk, bk = params["wk"], params["bk"]   # (Din, Dk), (1, Dk)
    wv, bv = params["wv"], params["bv"]   # (Din, Dk), (1, Dk)
    Dq = wq.shape[1]
    Dk = wk.shape[1]
    assert Dq == Dk, "scaled_dot_prod requires dim_q == dim_k"

    TQ = q_tile or _pick_tile(S)
    TK = kv_tile or _pick_tile(S)
    assert S % TQ == 0 and S % TK == 0
    nq, nk = S // TQ, S // TK

    # Scale uses the projected query dim (matches `query.size(-1) ** 0.5`
    # applied *after* the q projection in the PyTorch module).
    scale = 1.0 / math.sqrt(Dq)
    mxu_dtype = jnp.bfloat16 if use_bf16_matmul else jnp.float32

    def kernel(q_in, k_in, v_in,
               wq_r, bq_r, wk_r, bk_r, wv_r, bv_r,
               o_ref, q_sc, m_sc, l_sc, acc_sc):
        ki = pl.program_id(2)

        @pl.when(ki == 0)
        def _init():
            # Project q once per (batch, q-tile); fold the softmax scale in.
            qp = jnp.dot(q_in[...].astype(mxu_dtype),
                         wq_r[...].astype(mxu_dtype),
                         preferred_element_type=jnp.float32) + bq_r[...]
            q_sc[...] = qp * scale
            m_sc[...] = jnp.full(m_sc.shape, -jnp.inf, m_sc.dtype)
            l_sc[...] = jnp.zeros(l_sc.shape, l_sc.dtype)
            acc_sc[...] = jnp.zeros(acc_sc.shape, acc_sc.dtype)

        # Project this kv tile.
        k = jnp.dot(k_in[...].astype(mxu_dtype), wk_r[...].astype(mxu_dtype),
                    preferred_element_type=jnp.float32) + bk_r[...]
        v = jnp.dot(v_in[...].astype(mxu_dtype), wv_r[...].astype(mxu_dtype),
                    preferred_element_type=jnp.float32) + bv_r[...]

        # (TQ, TK) scores via NT matmul (contract last dims; no transpose).
        s = lax.dot_general(q_sc[...].astype(mxu_dtype), k.astype(mxu_dtype),
                            dimension_numbers=(((1,), (1,)), ((), ())),
                            preferred_element_type=jnp.float32)

        # Online softmax update (f32).
        m_prev = m_sc[...]
        m_new = jnp.maximum(m_prev, jnp.max(s, axis=-1, keepdims=True))
        alpha = jnp.exp(m_prev - m_new)
        p = jnp.exp(s - m_new)
        l_sc[...] = alpha * l_sc[...] + jnp.sum(p, axis=-1, keepdims=True)
        acc_sc[...] = alpha * acc_sc[...] + jnp.dot(
            p.astype(mxu_dtype), v.astype(mxu_dtype),
            preferred_element_type=jnp.float32)
        m_sc[...] = m_new

        @pl.when(ki == pl.num_programs(2) - 1)
        def _finalize():
            inv_l = pl.reciprocal(l_sc[...], approx=True)
            o_ref[...] = (acc_sc[...] * inv_l).astype(o_ref.dtype)

    q_spec = pl.BlockSpec((None, TQ, Din), lambda b, qi, ki: (b, qi, 0))
    kv_spec = pl.BlockSpec((None, TK, Din), lambda b, qi, ki: (b, ki, 0))
    w_spec = lambda shape: pl.BlockSpec(shape, lambda b, qi, ki: (0, 0))

    return pl.pallas_call(
        kernel,
        out_shape=jax.ShapeDtypeStruct((B, S, Dk), query.dtype),
        grid_spec=pltpu.PrefetchScalarGridSpec(
            num_scalar_prefetch=0,
            grid=(B, nq, nk),
            in_specs=[
                q_spec, kv_spec, kv_spec,
                w_spec((Din, Dq)), w_spec((1, Dq)),
                w_spec((Din, Dk)), w_spec((1, Dk)),
                w_spec((Din, Dk)), w_spec((1, Dk)),
            ],
            out_specs=pl.BlockSpec((None, TQ, Dk), lambda b, qi, ki: (b, qi, 0)),
            scratch_shapes=[
                pltpu.VMEM((TQ, Dq), jnp.float32),   # scaled projected q
                pltpu.VMEM((TQ, 1), jnp.float32),    # running max
                pltpu.VMEM((TQ, 1), jnp.float32),    # running denom
                pltpu.VMEM((TQ, Dk), jnp.float32),   # output accumulator
            ],
        ),
        compiler_params=pltpu.CompilerParams(
            dimension_semantics=("parallel", "parallel", "arbitrary"),
            vmem_limit_bytes=48 * 1024 * 1024),
    )(query, key, value, wq, bq, wk, bk, wv, bv)


def _reference(query, key, value, params):
    q = query @ params["wq"] + params["bq"][0]
    k = key @ params["wk"] + params["bk"][0]
    v = value @ params["wv"] + params["bv"][0]
    scores = jnp.einsum("bqd,bkd->bqk", q, k) / math.sqrt(q.shape[-1])
    attn = jax.nn.softmax(scores, axis=-1)
    return jnp.einsum("bqk,bkd->bqd", attn, v)


if __name__ == "__main__":
    B, S, dim_in, dim_q, dim_k = 2, 8, 32, 16, 16

    key0 = jax.random.PRNGKey(0)
    ks = jax.random.split(key0, 9)

    # Deterministic parameter init (shapes match nn.Linear(dim_in, dim_*)).
    params = {
        "wq": jax.random.normal(ks[0], (dim_in, dim_q), jnp.float32) * 0.1,
        "bq": jax.random.normal(ks[1], (1, dim_q), jnp.float32) * 0.1,
        "wk": jax.random.normal(ks[2], (dim_in, dim_k), jnp.float32) * 0.1,
        "bk": jax.random.normal(ks[3], (1, dim_k), jnp.float32) * 0.1,
        "wv": jax.random.normal(ks[4], (dim_in, dim_k), jnp.float32) * 0.1,
        "bv": jax.random.normal(ks[5], (1, dim_k), jnp.float32) * 0.1,
    }

    query = jax.random.normal(ks[6], (B, S, dim_in), jnp.float32)
    key = jax.random.normal(ks[7], (B, S, dim_in), jnp.float32)
    value = jax.random.normal(ks[8], (B, S, dim_in), jnp.float32)

    out = attention_head(query, key, value, params)
    out = jax.block_until_ready(out)

    ref = _reference(query, key, value, params)
    assert out.shape == (B, S, dim_k)
    # Tolerance loosened slightly (from 1e-4) to cover the approx EUP
    # reciprocal used for the softmax normalization.
    assert jnp.allclose(out, ref, atol=2e-3, rtol=2e-3), "mismatch vs reference"

    print("KERNEL_OK")
</pallas_src>

<mosaic_0001>
module attributes {stable_mosaic.version = 11 : i64} {
  func.func @kernel(%arg0: i32, %arg1: i32, %arg2: i32, %arg3: memref<1x8x32xf32, #tpu.memory_space<vmem>>, %arg4: memref<1x8x32xf32, #tpu.memory_space<vmem>>, %arg5: memref<1x8x32xf32, #tpu.memory_space<vmem>>, %arg6: memref<32x16xf32, #tpu.memory_space<vmem>>, %arg7: memref<1x16xf32, #tpu.memory_space<vmem>>, %arg8: memref<32x16xf32, #tpu.memory_space<vmem>>, %arg9: memref<1x16xf32, #tpu.memory_space<vmem>>, %arg10: memref<32x16xf32, #tpu.memory_space<vmem>>, %arg11: memref<1x16xf32, #tpu.memory_space<vmem>>, %arg12: memref<1x8x16xf32, #tpu.memory_space<vmem>>, %arg13: memref<8x16xf32, #tpu.memory_space<vmem>>, %arg14: memref<8x1xf32, #tpu.memory_space<vmem>>, %arg15: memref<8x1xf32, #tpu.memory_space<vmem>>, %arg16: memref<8x16xf32, #tpu.memory_space<vmem>>) attributes {dimension_semantics = [#tpu.dimension_semantics<parallel>, #tpu.dimension_semantics<parallel>, #tpu.dimension_semantics<arbitrary>], iteration_bounds = array<i64: 2, 1, 1>, scalar_prefetch = 0 : i64, scratch_operands = 4 : i64, tpu.core_type = #tpu.core_type<tc>, window_params = [{transform_indices = @transform_0, window_bounds = array<i64: 1, 8, 32>}, {transform_indices = @transform_1, window_bounds = array<i64: 1, 8, 32>}, {transform_indices = @transform_2, window_bounds = array<i64: 1, 8, 32>}, {pipeline_mode = #tpu.pipeline_mode<synchronous>, transform_indices = @transform_3, window_bounds = array<i64: 32, 16>}, {pipeline_mode = #tpu.pipeline_mode<synchronous>, transform_indices = @transform_4, window_bounds = array<i64: 1, 16>}, {pipeline_mode = #tpu.pipeline_mode<synchronous>, transform_indices = @transform_5, window_bounds = array<i64: 32, 16>}, {pipeline_mode = #tpu.pipeline_mode<synchronous>, transform_indices = @transform_6, window_bounds = array<i64: 1, 16>}, {pipeline_mode = #tpu.pipeline_mode<synchronous>, transform_indices = @transform_7, window_bounds = array<i64: 32, 16>}, {pipeline_mode = #tpu.pipeline_mode<synchronous>, transform_indices = @transform_8, window_bounds = array<i64: 1, 16>}, {transform_indices = @transform_9, window_bounds = array<i64: 1, 8, 16>}]} {
    %c0_i32 = arith.constant 0 : i32
    %0 = arith.cmpi eq, %arg2, %c0_i32 : i32
    %1 = arith.extui %0 : i1 to i32
    %c0_i32_0 = arith.constant 0 : i32
    %2 = arith.cmpi ne, %1, %c0_i32_0 : i32
    scf.if %2 {
      %c0_35 = arith.constant 0 : index
      %c0_36 = arith.constant 0 : index
      %c0_37 = arith.constant 0 : index
      %44 = vector.load %arg3[%c0_35, %c0_36, %c0_37] : memref<1x8x32xf32, #tpu.memory_space<vmem>>, vector<1x8x32xf32>
      %45 = vector.shape_cast %44 : vector<1x8x32xf32> to vector<8x32xf32>
      %c0_38 = arith.constant 0 : index
      %c0_39 = arith.constant 0 : index
      %46 = vector.load %arg6[%c0_38, %c0_39] : memref<32x16xf32, #tpu.memory_space<vmem>>, vector<32x16xf32>
      %cst_40 = arith.constant dense<0.000000e+00> : vector<8x16xf32>
      %47 = tpu.matmul %45, %46, %cst_40 {dimension_numbers = #tpu.dot_dimension_numbers<[1], [0], [0], [1], [0, 0, 1, 1], [], []>} : vector<8x32xf32>, vector<32x16xf32>, vector<8x16xf32> -> vector<8x16xf32>
      %c0_41 = arith.constant 0 : index
      %c0_42 = arith.constant 0 : index
      %48 = vector.load %arg7[%c0_41, %c0_42] : memref<1x16xf32, #tpu.memory_space<vmem>>, vector<1x16xf32>
      %49 = vector.broadcast %48 : vector<1x16xf32> to vector<8x16xf32>
      %50 = arith.addf %47, %49 : vector<8x16xf32>
      %cst_43 = arith.constant 2.500000e-01 : f32
      %51 = vector.broadcast %cst_43 : f32 to vector<8x16xf32>
      %52 = arith.mulf %50, %51 : vector<8x16xf32>
      %c0_44 = arith.constant 0 : index
      %c0_45 = arith.constant 0 : index
      %53 = vector.load %arg13[%c0_44, %c0_45] : memref<8x16xf32, #tpu.memory_space<vmem>>, vector<8x16xf32>
      tpu.vector_store %arg13[%c0_44, %c0_45], %52 {strides = array<i32>} : memref<8x16xf32, #tpu.memory_space<vmem>>, vector<8x16xf32>,
      %cst_46 = arith.constant 0xFF800000 : f32
      %54 = vector.broadcast %cst_46 : f32 to vector<8x1xf32>
      %c0_47 = arith.constant 0 : index
      %c0_48 = arith.constant 0 : index
      %55 = vector.load %arg14[%c0_47, %c0_48] : memref<8x1xf32, #tpu.memory_space<vmem>>, vector<8x1xf32>
      tpu.vector_store %arg14[%c0_47, %c0_48], %54 {strides = array<i32>} : memref<8x1xf32, #tpu.memory_space<vmem>>, vector<8x1xf32>,
      %cst_49 = arith.constant 0.000000e+00 : f32
      %56 = vector.broadcast %cst_49 : f32 to vector<8x1xf32>
      %c0_50 = arith.constant 0 : index
      %c0_51 = arith.constant 0 : index
      %57 = vector.load %arg15[%c0_50, %c0_51] : memref<8x1xf32, #tpu.memory_space<vmem>>, vector<8x1xf32>
      tpu.vector_store %arg15[%c0_50, %c0_51], %56 {strides = array<i32>} : memref<8x1xf32, #tpu.memory_space<vmem>>, vector<8x1xf32>,
      %cst_52 = arith.constant 0.000000e+00 : f32
      %58 = vector.broadcast %cst_52 : f32 to vector<8x16xf32>
      %c0_53 = arith.constant 0 : index
      %c0_54 = arith.constant 0 : index
      %59 = vector.load %arg16[%c0_53, %c0_54] : memref<8x16xf32, #tpu.memory_space<vmem>>, vector<8x16xf32>
      tpu.vector_store %arg16[%c0_53, %c0_54], %58 {strides = array<i32>} : memref<8x16xf32, #tpu.memory_space<vmem>>, vector<8x16xf32>,
    } else {
    }
    %c0 = arith.constant 0 : index
    %c0_1 = arith.constant 0 : index
    %c0_2 = arith.constant 0 : index
    %3 = vector.load %arg4[%c0, %c0_1, %c0_2] : memref<1x8x32xf32, #tpu.memory_space<vmem>>, vector<1x8x32xf32>
    %4 = vector.shape_cast %3 : vector<1x8x32xf32> to vector<8x32xf32>
    %c0_3 = arith.constant 0 : index
    %c0_4 = arith.constant 0 : index
    %5 = vector.load %arg8[%c0_3, %c0_4] : memref<32x16xf32, #tpu.memory_space<vmem>>, vector<32x16xf32>
    %cst = arith.constant dense<0.000000e+00> : vector<8x16xf32>
    %6 = tpu.matmul %4, %5, %cst {dimension_numbers = #tpu.dot_dimension_numbers<[1], [0], [0], [1], [0, 0, 1, 1], [], []>} : vector<8x32xf32>, vector<32x16xf32>, vector<8x16xf32> -> vector<8x16xf32>
    %c0_5 = arith.constant 0 : index
    %c0_6 = arith.constant 0 : index
    %7 = vector.load %arg9[%c0_5, %c0_6] : memref<1x16xf32, #tpu.memory_space<vmem>>, vector<1x16xf32>
    %8 = vector.broadcast %7 : vector<1x16xf32> to vector<8x16xf32>
    %9 = arith.addf %6, %8 : vector<8x16xf32>
    %c0_7 = arith.constant 0 : index
    %c0_8 = arith.constant 0 : index
    %c0_9 = arith.constant 0 : index
    %10 = vector.load %arg5[%c0_7, %c0_8, %c0_9] : memref<1x8x32xf32, #tpu.memory_space<vmem>>, vector<1x8x32xf32>
    %11 = vector.shape_cast %10 : vector<1x8x32xf32> to vector<8x32xf32>
    %c0_10 = arith.constant 0 : index
    %c0_11 = arith.constant 0 : index
    %12 = vector.load %arg10[%c0_10, %c0_11] : memref<32x16xf32, #tpu.memory_space<vmem>>, vector<32x16xf32>
    %cst_12 = arith.constant dense<0.000000e+00> : vector<8x16xf32>
    %13 = tpu.matmul %11, %12, %cst_12 {dimension_numbers = #tpu.dot_dimension_numbers<[1], [0], [0], [1], [0, 0, 1, 1], [], []>} : vector<8x32xf32>, vector<32x16xf32>, vector<8x16xf32> -> vector<8x16xf32>
    %c0_13 = arith.constant 0 : index
    %c0_14 = arith.constant 0 : index
    %14 = vector.load %arg11[%c0_13, %c0_14] : memref<1x16xf32, #tpu.memory_space<vmem>>, vector<1x16xf32>
    %15 = vector.broadcast %14 : vector<1x16xf32> to vector<8x16xf32>
    %16 = arith.addf %13, %15 : vector<8x16xf32>
    %c0_15 = arith.constant 0 : index
    %c0_16 = arith.constant 0 : index
    %17 = vector.load %arg13[%c0_15, %c0_16] : memref<8x16xf32, #tpu.memory_space<vmem>>, vector<8x16xf32>
    %cst_17 = arith.constant dense<0.000000e+00> : vector<8x8xf32>
    %18 = tpu.matmul %17, %9, %cst_17 {dimension_numbers = #tpu.dot_dimension_numbers<[1], [1], [0], [0], [0, 0, 1, 0], [], []>} : vector<8x16xf32>, vector<8x16xf32>, vector<8x8xf32> -> vector<8x8xf32>
    %c0_18 = arith.constant 0 : index
    %c0_19 = arith.constant 0 : index
    %19 = vector.load %arg14[%c0_18, %c0_19] : memref<8x1xf32, #tpu.memory_space<vmem>>, vector<8x1xf32>
    %cst_20 = arith.constant dense<0xFF800000> : vector<8xf32>
    %20 = vector.multi_reduction <maximumf>, %18, %cst_20 [1] : vector<8x8xf32> to vector<8xf32>
    %21 = vector.shape_cast %20 : vector<8xf32> to vector<8x1xf32>
    %22 = arith.maximumf %19, %21 : vector<8x1xf32>
    %23 = arith.subf %19, %22 : vector<8x1xf32>
    %24 = math.exp %23 : vector<8x1xf32>
    %25 = vector.broadcast %22 : vector<8x1xf32> to vector<8x8xf32>
    %26 = arith.subf %18, %25 : vector<8x8xf32>
    %27 = math.exp %26 : vector<8x8xf32>
    %c0_21 = arith.constant 0 : index
    %c0_22 = arith.constant 0 : index
    %28 = vector.load %arg15[%c0_21, %c0_22] : memref<8x1xf32, #tpu.memory_space<vmem>>, vector<8x1xf32>
    %29 = arith.mulf %24, %28 : vector<8x1xf32>
    %cst_23 = arith.constant dense<0.000000e+00> : vector<8xf32>
    %30 = vector.multi_reduction <add>, %27, %cst_23 [1] : vector<8x8xf32> to vector<8xf32>
    %31 = vector.shape_cast %30 : vector<8xf32> to vector<8x1xf32>
    %32 = arith.addf %29, %31 : vector<8x1xf32>
    %c0_24 = arith.constant 0 : index
    %c0_25 = arith.constant 0 : index
    %33 = vector.load %arg15[%c0_24, %c0_25] : memref<8x1xf32, #tpu.memory_space<vmem>>, vector<8x1xf32>
    tpu.vector_store %arg15[%c0_24, %c0_25], %32 {strides = array<i32>} : memref<8x1xf32, #tpu.memory_space<vmem>>, vector<8x1xf32>,
    %c0_26 = arith.constant 0 : index
    %c0_27 = arith.constant 0 : index
    %34 = vector.load %arg16[%c0_26, %c0_27] : memref<8x16xf32, #tpu.memory_space<vmem>>, vector<8x16xf32>
    %35 = vector.broadcast %24 : vector<8x1xf32> to vector<8x16xf32>
    %36 = arith.mulf %35, %34 : vector<8x16xf32>
    %cst_28 = arith.constant dense<0.000000e+00> : vector<8x16xf32>
    %37 = tpu.matmul %27, %16, %cst_28 {dimension_numbers = #tpu.dot_dimension_numbers<[1], [0], [0], [1], [0, 0, 1, 1], [], []>} : vector<8x8xf32>, vector<8x16xf32>, vector<8x16xf32> -> vector<8x16xf32>
    %38 = arith.addf %36, %37 : vector<8x16xf32>
    %c0_29 = arith.constant 0 : index
    %c0_30 = arith.constant 0 : index
    %39 = vector.load %arg16[%c0_29, %c0_30] : memref<8x16xf32, #tpu.memory_space<vmem>>, vector<8x16xf32>
    tpu.vector_store %arg16[%c0_29, %c0_30], %38 {strides = array<i32>} : memref<8x16xf32, #tpu.memory_space<vmem>>, vector<8x16xf32>,
    %c0_31 = arith.constant 0 : index
    %c0_32 = arith.constant 0 : index
    %40 = vector.load %arg14[%c0_31, %c0_32] : memref<8x1xf32, #tpu.memory_space<vmem>>, vector<8x1xf32>
    tpu.vector_store %arg14[%c0_31, %c0_32], %22 {strides = array<i32>} : memref<8x1xf32, #tpu.memory_space<vmem>>, vector<8x1xf32>,
    %c0_i32_33 = arith.constant 0 : i32
    %41 = arith.cmpi eq, %arg2, %c0_i32_33 : i32
    %42 = arith.extui %41 : i1 to i32
    %c0_i32_34 = arith.constant 0 : i32
    %43 = arith.cmpi ne, %42, %c0_i32_34 : i32
    scf.if %43 {
      %c0_35 = arith.constant 0 : index
      %c0_36 = arith.constant 0 : index
      %44 = vector.load %arg15[%c0_35, %c0_36] : memref<8x1xf32, #tpu.memory_space<vmem>>, vector<8x1xf32>
      %45 = tpu.reciprocal %44 {approx = true} : vector<8x1xf32> -> vector<8x1xf32>
      %c0_37 = arith.constant 0 : index
      %c0_38 = arith.constant 0 : index
      %46 = vector.load %arg16[%c0_37, %c0_38] : memref<8x16xf32, #tpu.memory_space<vmem>>, vector<8x16xf32>
      %47 = vector.broadcast %45 : vector<8x1xf32> to vector<8x16xf32>
      %48 = arith.mulf %46, %47 : vector<8x16xf32>
      %c0_39 = arith.constant 0 : index
      %c0_40 = arith.constant 0 : index
      %c0_41 = arith.constant 0 : index
      %49 = vector.load %arg12[%c0_39, %c0_40, %c0_41] : memref<1x8x16xf32, #tpu.memory_space<vmem>>, vector<1x8x16xf32>
      %50 = vector.shape_cast %49 : vector<1x8x16xf32> to vector<8x16xf32>
      %51 = vector.shape_cast %48 : vector<8x16xf32> to vector<1x8x16xf32>
      tpu.vector_store %arg12[%c0_39, %c0_40, %c0_41], %51 {strides = array<i32>} : memref<1x8x16xf32, #tpu.memory_space<vmem>>, vector<1x8x16xf32>,
    } else {
    }
    return
  }
  func.func @transform_0(%arg0: i32, %arg1: i32, %arg2: i32) -> (i32, i32, i32) {
    %c0_i32 = arith.constant 0 : i32
    %c0_i32_0 = arith.constant 0 : i32
    return %arg0, %arg1, %c0_i32 : i32, i32, i32
  }
  func.func @transform_1(%arg0: i32, %arg1: i32, %arg2: i32) -> (i32, i32, i32) {
    %c0_i32 = arith.constant 0 : i32
    %c0_i32_0 = arith.constant 0 : i32
    return %arg0, %arg2, %c0_i32 : i32, i32, i32
  }
  func.func @transform_2(%arg0: i32, %arg1: i32, %arg2: i32) -> (i32, i32, i32) {
    %c0_i32 = arith.constant 0 : i32
    %c0_i32_0 = arith.constant 0 : i32
    return %arg0, %arg2, %c0_i32 : i32, i32, i32
  }
  func.func @transform_3(%arg0: i32, %arg1: i32, %arg2: i32) -> (i32, i32) {
    %c0_i32 = arith.constant 0 : i32
    %c0_i32_0 = arith.constant 0 : i32
    %c0_i32_1 = arith.constant 0 : i32
    return %c0_i32, %c0_i32_0 : i32, i32
  }
  func.func @transform_4(%arg0: i32, %arg1: i32, %arg2: i32) -> (i32, i32) {
    %c0_i32 = arith.constant 0 : i32
    %c0_i32_0 = arith.constant 0 : i32
    %c0_i32_1 = arith.constant 0 : i32
    return %c0_i32, %c0_i32_0 : i32, i32
  }
  func.func @transform_5(%arg0: i32, %arg1: i32, %arg2: i32) -> (i32, i32) {
    %c0_i32 = arith.constant 0 : i32
    %c0_i32_0 = arith.constant 0 : i32
    %c0_i32_1 = arith.constant 0 : i32
    return %c0_i32, %c0_i32_0 : i32, i32
  }
  func.func @transform_6(%arg0: i32, %arg1: i32, %arg2: i32) -> (i32, i32) {
    %c0_i32 = arith.constant 0 : i32
    %c0_i32_0 = arith.constant 0 : i32
    %c0_i32_1 = arith.constant 0 : i32
    return %c0_i32, %c0_i32_0 : i32, i32
  }
  func.func @transform_7(%arg0: i32, %arg1: i32, %arg2: i32) -> (i32, i32) {
    %c0_i32 = arith.constant 0 : i32
    %c0_i32_0 = arith.constant 0 : i32
    %c0_i32_1 = arith.constant 0 : i32
    return %c0_i32, %c0_i32_0 : i32, i32
  }
  func.func @transform_8(%arg0: i32, %arg1: i32, %arg2: i32) -> (i32, i32) {
    %c0_i32 = arith.constant 0 : i32
    %c0_i32_0 = arith.constant 0 : i32
    %c0_i32_1 = arith.constant 0 : i32
    return %c0_i32, %c0_i32_0 : i32, i32
  }
  func.func @transform_9(%arg0: i32, %arg1: i32, %arg2: i32) -> (i32, i32, i32) {
    %c0_i32 = arith.constant 0 : i32
    %c0_i32_0 = arith.constant 0 : i32
    return %arg0, %arg1, %c0_i32 : i32, i32, i32
  }
}

</mosaic_0001>

<llo_original>
// kernel: tpu_custom_call.1
$region0: #{tpu_custom_call.1}
  #allocation0 [shape = 'u32[]', space=smem, size = 0x4, offset = 0x4, fixed_abs, tag = 'smem constant byte address 0x4 - core index']
  #allocation1 [shape = 'u32[72,128]{1,0:T(1,128)}', space=vmem, size = 0x9000, scoped, tag = 'internal scratch']
  #allocation2 [shape = 'f32[8,16]{1,0:T(8,128)}', space=vmem, size = 0x1000, scoped, tag = 'scratch operand']
  #allocation3 [shape = 'f32[8,1]{1,0:T(8,128)}', space=vmem, size = 0x1000, scoped, tag = 'scratch operand']
  #allocation4 [shape = 'f32[8,1]{1,0:T(8,128)}', space=vmem, size = 0x1000, scoped, tag = 'scratch operand']
  #allocation5 [shape = 'f32[8,16]{1,0:T(8,128)}', space=vmem, size = 0x1000, scoped, tag = 'scratch operand']
  %s0 = inlined_call_operand.vmem [shape: f32[2,8,32], index: 0, kind: input, shape index: {}]
  %s1 = inlined_call_operand.vmem [shape: f32[2,8,32], index: 1, kind: input, shape index: {}]
  %s2 = inlined_call_operand.vmem [shape: f32[2,8,32], index: 2, kind: input, shape index: {}]
  %s3 = inlined_call_operand.vmem [shape: f32[32,16], index: 3, kind: input, shape index: {}]
  %s4 = inlined_call_operand.vmem [shape: f32[1,16], index: 4, kind: input, shape index: {}]
  %s5 = inlined_call_operand.vmem [shape: f32[32,16], index: 5, kind: input, shape index: {}]
  %s6 = inlined_call_operand.vmem [shape: f32[1,16], index: 6, kind: input, shape index: {}]
  %s7 = inlined_call_operand.vmem [shape: f32[32,16], index: 7, kind: input, shape index: {}]
  %s8 = inlined_call_operand.vmem [shape: f32[1,16], index: 8, kind: input, shape index: {}]
  %s9 = inlined_call_operand.hbm [shape: f32[2,8,16], index: 9, kind: output, shape index: {}]
  %s10 = sld [smem:[#allocation0]]
  $region77: #{tpu_custom_call.1} parent=0
    _
  %s12 = ssub.s32 1, %s10
  %s13 = scalar_select 0, %s12, %s10
  $region1: #{tpu_custom_call.1} parent=0
    #allocation6 [shape = 'u8[8192]{0}', space=vmem, size = 0x2000, scoped, tag = 'output window, operand 0']
    #allocation7 [shape = 's32[2]{0}', space=sflag, size = 0x8, scoped, tag = 'scoped memory for tpu_custom_call.1']
    %14 = vsyncpa [#allocation7], 0
    %s15 = scalar_lea.sflag [#allocation7], 1
    %16 = vsyncpa %s15, 0
    loop: start=0, step=1, limit=4
    $region2: #{tpu_custom_call.1} parent=1 // loop_pre_header
      _
    $region3: #{tpu_custom_call.1} parent=1 // loop_header
      %s18 = sphi 0, %s22
      %p19 = scmp.ge.s32.totalorder %s18, 4
      %s25 = sphi 0, %s44
      %s26 = sphi 0, %s40
      %s27 = sphi 0, %s36
      %s28 = sphi 0, %s25
      %s29 = sphi 0, %s26
      %s30 = sphi 0, %s27
      %s31 = sphi 0, %s28
      %s32 = sphi 0, %s29
      %s33 = sphi 0, %s30
      %s49 = sphi 0, %s51
      %s52 = sphi 0, %s49
      %s53 = sphi 0, %s52
      %s69 = sphi 0, %s53
      %s77 = sphi 0, %s79
      %s80 = sphi 0, %s77
      %s81 = sphi 0, %s80
      %s97 = sphi 0, %s81
      %s105 = sphi 0, %s107
      %s108 = sphi 0, %s105
      %s109 = sphi 0, %s108
      %s125 = sphi 0, %s109
      %s129 = sphi 0, %s129
      %s131 = sphi 0, %s129
      %s132 = sphi 0, %s131
      %s146 = sphi 0, %s132
      %s150 = sphi 0, %s150
      %s152 = sphi 0, %s150
      %s153 = sphi 0, %s152
      %s167 = sphi 0, %s153
      %s171 = sphi 0, %s171
      %s173 = sphi 0, %s171
      %s174 = sphi 0, %s173
      %s188 = sphi 0, %s174
      %s192 = sphi 0, %s192
      %s194 = sphi 0, %s192
      %s195 = sphi 0, %s194
      %s209 = sphi 0, %s195
      %s213 = sphi 0, %s213
      %s215 = sphi 0, %s213
      %s216 = sphi 0, %s215
      %s230 = sphi 0, %s216
      %s234 = sphi 0, %s234
      %s236 = sphi 0, %s234
      %s237 = sphi 0, %s236
      %s251 = sphi 0, %s237
      %s259 = sphi 0, %s261
      %s262 = sphi 0, %s259
      %s263 = sphi 0, %s262
      %s279 = sphi 0, %s263
    $region4: #{tpu_custom_call.1} parent=1 // loop_header_branch
      %21 = sbr.rel (%p19) target = $region8
    $region5: #{tpu_custom_call.1} parent=1 // loop_body
      %s23 = ssub.s32 %s18, 1
      %s24 = ssub.s32 %s18, 2
      %s34 = sadd.s32 1, %s27
      %p35 = scmp.ge.s32.totalorder %s34, 1
      %s36 = scalar_select %p35, 0, %s34
      %s37 = sadd.s32 1, %s26
      %s38 = scalar_select %p35, %s37, %s26
      %p39 = scmp.ge.s32.totalorder %s38, 1
      %s40 = scalar_select %p39, 0, %s38
      %s41 = sadd.s32 1, %s25
      %s42 = scalar_select %p39, %s41, %s25
      %p43 = scmp.ge.s32.totalorder %s42, 2
      %s44 = scalar_select %p43, 0, %s42
      %s45 = ssub.s32 %s25, %s44
      %s46 = ssub.s32 %s26, %s40
      %s47 = sor.u32 %s45, %s46
      %p48 = scmp.eq.s32.totalorder %s47, 0
      %s50 = sadd.s32 %s49, 1
      %s51 = scalar_select %p48, %s49, %s50
      %p54 = pneg %p48
      %p55 = scmp.eq.s32.totalorder %s18, 1
      %p56 = por %p54, %p55
      %p57 = scmp.ne.s32.totalorder %s49, %s52
      %p58 = scmp.eq.s32.totalorder %s18, 0
      %p59 = por %p57, %p58
      %p60 = scmp.ne.s32.totalorder %s49, %s52
      %p61 = scmp.eq.s32.totalorder %s23, 1
      %p62 = por %p60, %p61
      %p63 = scmp.ne.s32.totalorder %s52, %s53
      %p64 = scmp.eq.s32.totalorder %s23, 0
      %p65 = por %p63, %p64
      %p66 = scmp.ne.s32.totalorder %s52, %s53
      %p67 = scmp.eq.s32.totalorder %s24, 1
      %p68 = por %p66, %p67
      %p70 = scmp.ne.s32.totalorder %s53, %s69
      %p71 = scmp.eq.s32.totalorder %s24, 0
      %p72 = por %p70, %p71
      %s73 = ssub.s32 %s25, %s44
      %s74 = ssub.s32 %s27, %s36
      %s75 = sor.u32 %s73, %s74
      %p76 = scmp.eq.s32.totalorder %s75, 0
      %s78 = sadd.s32 %s77, 1
      %s79 = scalar_select %p76, %s77, %s78
      %p82 = pneg %p76
      %p83 = scmp.eq.s32.totalorder %s18, 1
      %p84 = por %p82, %p83
      %p85 = scmp.ne.s32.totalorder %s77, %s80
      %p86 = scmp.eq.s32.totalorder %s18, 0
      %p87 = por %p85, %p86
      %p88 = scmp.ne.s32.totalorder %s77, %s80
      %p89 = scmp.eq.s32.totalorder %s23, 1
      %p90 = por %p88, %p89
      %p91 = scmp.ne.s32.totalorder %s80, %s81
      %p92 = scmp.eq.s32.totalorder %s23, 0
      %p93 = por %p91, %p92
      %p94 = scmp.ne.s32.totalorder %s80, %s81
      %p95 = scmp.eq.s32.totalorder %s24, 1
      %p96 = por %p94, %p95
      %p98 = scmp.ne.s32.totalorder %s81, %s97
      %p99 = scmp.eq.s32.totalorder %s24, 0
      %p100 = por %p98, %p99
      %s101 = ssub.s32 %s25, %s44
      %s102 = ssub.s32 %s27, %s36
      %s103 = sor.u32 %s101, %s102
      %p104 = scmp.eq.s32.totalorder %s103, 0
      %s106 = sadd.s32 %s105, 1
      %s107 = scalar_select %p104, %s105, %s106
      %p110 = pneg %p104
      %p111 = scmp.eq.s32.totalorder %s18, 1
      %p112 = por %p110, %p111
      %p113 = scmp.ne.s32.totalorder %s105, %s108
      %p114 = scmp.eq.s32.totalorder %s18, 0
      %p115 = por %p113, %p114
      %p116 = scmp.ne.s32.totalorder %s105, %s108
      %p117 = scmp.eq.s32.totalorder %s23, 1
      %p118 = por %p116, %p117
      %p119 = scmp.ne.s32.totalorder %s108, %s109
      %p120 = scmp.eq.s32.totalorder %s23, 0
      %p121 = por %p119, %p120
      %p122 = scmp.ne.s32.totalorder %s108, %s109
      %p123 = scmp.eq.s32.totalorder %s24, 1
      %p124 = por %p122, %p123
      %p126 = scmp.ne.s32.totalorder %s109, %s125
      %p127 = scmp.eq.s32.totalorder %s24, 0
      %p128 = por %p126, %p127
      %s130 = sadd.s32 %s129, 1
      %p133 = scmp.eq.s32.totalorder %s18, 1
      %p134 = scmp.ne.s32.totalorder %s129, %s131
      %p135 = scmp.eq.s32.totalorder %s18, 0
      %p136 = por %p134, %p135
      %p137 = scmp.ne.s32.totalorder %s129, %s131
      %p138 = scmp.eq.s32.totalorder %s23, 1
      %p139 = por %p137, %p138
      %p140 = scmp.ne.s32.totalorder %s131, %s132
      %p141 = scmp.eq.s32.totalorder %s23, 0
      %p142 = por %p140, %p141
      %p143 = scmp.ne.s32.totalorder %s131, %s132
      %p144 = scmp.eq.s32.totalorder %s24, 1
      %p145 = por %p143, %p144
      %p147 = scmp.ne.s32.totalorder %s132, %s146
      %p148 = scmp.eq.s32.totalorder %s24, 0
      %p149 = por %p147, %p148
      %s151 = sadd.s32 %s150, 1
      %p154 = scmp.eq.s32.totalorder %s18, 1
      %p155 = scmp.ne.s32.totalorder %s150, %s152
      %p156 = scmp.eq.s32.totalorder %s18, 0
      %p157 = por %p155, %p156
      %p158 = scmp.ne.s32.totalorder %s150, %s152
      %p159 = scmp.eq.s32.totalorder %s23, 1
      %p160 = por %p158, %p159
      %p161 = scmp.ne.s32.totalorder %s152, %s153
      %p162 = scmp.eq.s32.totalorder %s23, 0
      %p163 = por %p161, %p162
      %p164 = scmp.ne.s32.totalorder %s152, %s153
      %p165 = scmp.eq.s32.totalorder %s24, 1
      %p166 = por %p164, %p165
      %p168 = scmp.ne.s32.totalorder %s153, %s167
      %p169 = scmp.eq.s32.totalorder %s24, 0
      %p170 = por %p168, %p169
      %s172 = sadd.s32 %s171, 1
      %p175 = scmp.eq.s32.totalorder %s18, 1
      %p176 = scmp.ne.s32.totalorder %s171, %s173
      %p177 = scmp.eq.s32.totalorder %s18, 0
      %p178 = por %p176, %p177
      %p179 = scmp.ne.s32.totalorder %s171, %s173
      %p180 = scmp.eq.s32.totalorder %s23, 1
      %p181 = por %p179, %p180
      %p182 = scmp.ne.s32.totalorder %s173, %s174
      %p183 = scmp.eq.s32.totalorder %s23, 0
      %p184 = por %p182, %p183
      %p185 = scmp.ne.s32.totalorder %s173, %s174
      %p186 = scmp.eq.s32.totalorder %s24, 1
      %p187 = por %p185, %p186
      %p189 = scmp.ne.s32.totalorder %s174, %s188
      %p190 = scmp.eq.s32.totalorder %s24, 0
      %p191 = por %p189, %p190
      %s193 = sadd.s32 %s192, 1
      %p196 = scmp.eq.s32.totalorder %s18, 1
      %p197 = scmp.ne.s32.totalorder %s192, %s194
      %p198 = scmp.eq.s32.totalorder %s18, 0
      %p199 = por %p197, %p198
      %p200 = scmp.ne.s32.totalorder %s192, %s194
      %p201 = scmp.eq.s32.totalorder %s23, 1
      %p202 = por %p200, %p201
      %p203 = scmp.ne.s32.totalorder %s194, %s195
      %p204 = scmp.eq.s32.totalorder %s23, 0
      %p205 = por %p203, %p204
      %p206 = scmp.ne.s32.totalorder %s194, %s195
      %p207 = scmp.eq.s32.totalorder %s24, 1
      %p208 = por %p206, %p207
      %p210 = scmp.ne.s32.totalorder %s195, %s209
      %p211 = scmp.eq.s32.totalorder %s24, 0
      %p212 = por %p210, %p211
      %s214 = sadd.s32 %s213, 1
      %p217 = scmp.eq.s32.totalorder %s18, 1
      %p218 = scmp.ne.s32.totalorder %s213, %s215
      %p219 = scmp.eq.s32.totalorder %s18, 0
      %p220 = por %p218, %p219
      %p221 = scmp.ne.s32.totalorder %s213, %s215
      %p222 = scmp.eq.s32.totalorder %s23, 1
      %p223 = por %p221, %p222
      %p224 = scmp.ne.s32.totalorder %s215, %s216
      %p225 = scmp.eq.s32.totalorder %s23, 0
      %p226 = por %p224, %p225
      %p227 = scmp.ne.s32.totalorder %s215, %s216
      %p228 = scmp.eq.s32.totalorder %s24, 1
      %p229 = por %p227, %p228
      %p231 = scmp.ne.s32.totalorder %s216, %s230
      %p232 = scmp.eq.s32.totalorder %s24, 0
      %p233 = por %p231, %p232
      %s235 = sadd.s32 %s234, 1
      %p238 = scmp.eq.s32.totalorder %s18, 1
      %p239 = scmp.ne.s32.totalorder %s234, %s236
      %p240 = scmp.eq.s32.totalorder %s18, 0
      %p241 = por %p239, %p240
      %p242 = scmp.ne.s32.totalorder %s234, %s236
      %p243 = scmp.eq.s32.totalorder %s23, 1
      %p244 = por %p242, %p243
      %p245 = scmp.ne.s32.totalorder %s236, %s237
      %p246 = scmp.eq.s32.totalorder %s23, 0
      %p247 = por %p245, %p246
      %p248 = scmp.ne.s32.totalorder %s236, %s237
      %p249 = scmp.eq.s32.totalorder %s24, 1
      %p250 = por %p248, %p249
      %p252 = scmp.ne.s32.totalorder %s237, %s251
      %p253 = scmp.eq.s32.totalorder %s24, 0
      %p254 = por %p252, %p253
      %s255 = ssub.s32 %s25, %s44
      %s256 = ssub.s32 %s26, %s40
      %s257 = sor.u32 %s255, %s256
      %p258 = scmp.eq.s32.totalorder %s257, 0
      %s260 = sadd.s32 %s259, 1
      %s261 = scalar_select %p258, %s259, %s260
      %p264 = pneg %p258
      %p265 = scmp.eq.s32.totalorder %s18, 1
      %p266 = por %p264, %p265
      %p267 = scmp.ne.s32.totalorder %s259, %s262
      %p268 = scmp.eq.s32.totalorder %s18, 0
      %p269 = por %p267, %p268
      %p270 = scmp.ne.s32.totalorder %s259, %s262
      %p271 = scmp.eq.s32.totalorder %s23, 1
      %p272 = por %p270, %p271
      %p273 = scmp.ne.s32.totalorder %s262, %s263
      %p274 = scmp.eq.s32.totalorder %s23, 0
      %p275 = por %p273, %p274
      %p276 = scmp.ne.s32.totalorder %s262, %s263
      %p277 = scmp.eq.s32.totalorder %s24, 1
      %p278 = por %p276, %p277
      %p280 = scmp.ne.s32.totalorder %s263, %s279
      %p281 = scmp.eq.s32.totalorder %s24, 0
      %p282 = por %p280, %p281
      %p283 = scmp.le.s32.totalorder 1, %s18
      %p284 = scmp.lt.s32.totalorder %s18, 3
      %p285 = pnand %p283, %p284
      %p286 = pneg %p285
      // Predicated region
      $region9: #{tpu_custom_call.1} parent=5 // pred_check
        _
      $region10: #{tpu_custom_call.1} parent=5 // pred_check_branch
        %288 = sbr.rel (%p285) target = $region12
      $region11: #{tpu_custom_call.1} parent=5 // pred_region
        %s289 = ssub.s32 %s18, 1
        // Predicated region
        $region13: #{tpu_custom_call.1} parent=11 // pred_check
          %p290 = pneg %p142
        $region14: #{tpu_custom_call.1} parent=11 // pred_check_branch
          %292 = sbr.rel (%p290) target = $region16
        $region15: #{tpu_custom_call.1} parent=11 // pred_region
          _
        $region16: #{tpu_custom_call.1} parent=11 // pred_fallthru
          _
        // Predicated region
        $region17: #{tpu_custom_call.1} parent=11 // pred_check
          %p293 = pneg %p163
        $region18: #{tpu_custom_call.1} parent=11 // pred_check_branch
          %295 = sbr.rel (%p293) target = $region20
        $region19: #{tpu_custom_call.1} parent=11 // pred_region
          _
        $region20: #{tpu_custom_call.1} parent=11 // pred_fallthru
          _
        // Predicated region
        $region21: #{tpu_custom_call.1} parent=11 // pred_check
          %p296 = pneg %p184
        $region22: #{tpu_custom_call.1} parent=11 // pred_check_branch
          %298 = sbr.rel (%p296) target = $region24
        $region23: #{tpu_custom_call.1} parent=11 // pred_region
          _
        $region24: #{tpu_custom_call.1} parent=11 // pred_fallthru
          _
        // Predicated region
        $region25: #{tpu_custom_call.1} parent=11 // pred_check
          %p299 = pneg %p205
        $region26: #{tpu_custom_call.1} parent=11 // pred_check_branch
          %301 = sbr.rel (%p299) target = $region28
        $region27: #{tpu_custom_call.1} parent=11 // pred_region
          _
        $region28: #{tpu_custom_call.1} parent=11 // pred_fallthru
          _
        // Predicated region
        $region29: #{tpu_custom_call.1} parent=11 // pred_check
          %p302 = pneg %p226
        $region30: #{tpu_custom_call.1} parent=11 // pred_check_branch
          %304 = sbr.rel (%p302) target = $region32
        $region31: #{tpu_custom_call.1} parent=11 // pred_region
          _
        $region32: #{tpu_custom_call.1} parent=11 // pred_fallthru
          _
        // Predicated region
        $region33: #{tpu_custom_call.1} parent=11 // pred_check
          %p305 = pneg %p247
        $region34: #{tpu_custom_call.1} parent=11 // pred_check_branch
          %307 = sbr.rel (%p305) target = $region36
        $region35: #{tpu_custom_call.1} parent=11 // pred_region
          _
        $region36: #{tpu_custom_call.1} parent=11 // pred_fallthru
          _
      $region12: #{tpu_custom_call.1} parent=5 // pred_fallthru
        _
      %p308 = scmp.lt.s32.totalorder %s18, 2
      // Predicated region
      $region37: #{tpu_custom_call.1} parent=5 // pred_check
        %p309 = pneg %p308
      $region38: #{tpu_custom_call.1} parent=5 // pred_check_branch
        %311 = sbr.rel (%p309) target = $region40
      $region39: #{tpu_custom_call.1} parent=5 // pred_region
        // Predicated region
        $region41: #{tpu_custom_call.1} parent=39 // pred_check
          %p312 = pneg %p59
        $region42: #{tpu_custom_call.1} parent=39 // pred_check_branch
          %314 = sbr.rel (%p312) target = $region44
        $region43: #{tpu_custom_call.1} parent=39 // pred_region
          %p315 = scmp.lt.s32.totalorder %s25, 1
          %s316 = scalar_select %p315, %s25, 1
          %p317 = scmp.lt.s32.totalorder %s26, 0
          %s318 = scalar_select %p317, %s26, 0
          %s319 = sadd.s32 %s318, %s316
          %s320 = smul.addr %s319, 8
          %s321 = scalar_lea.vmem %s0, %s320
        $region44: #{tpu_custom_call.1} parent=39 // pred_fallthru
          _
        // Predicated region
        $region45: #{tpu_custom_call.1} parent=39 // pred_check
          %p322 = pneg %p87
        $region46: #{tpu_custom_call.1} parent=39 // pred_check_branch
          %324 = sbr.rel (%p322) target = $region48
        $region47: #{tpu_custom_call.1} parent=39 // pred_region
          %p325 = scmp.lt.s32.totalorder %s25, 1
          %s326 = scalar_select %p325, %s25, 1
          %p327 = scmp.lt.s32.totalorder %s27, 0
          %s328 = scalar_select %p327, %s27, 0
          %s329 = sadd.s32 %s328, %s326
          %s330 = smul.addr %s329, 8
          %s331 = scalar_lea.vmem %s1, %s330
        $region48: #{tpu_custom_call.1} parent=39 // pred_fallthru
          _
        // Predicated region
        $region49: #{tpu_custom_call.1} parent=39 // pred_check
          %p332 = pneg %p115
        $region50: #{tpu_custom_call.1} parent=39 // pred_check_branch
          %334 = sbr.rel (%p332) target = $region52
        $region51: #{tpu_custom_call.1} parent=39 // pred_region
          %p335 = scmp.lt.s32.totalorder %s25, 1
          %s336 = scalar_select %p335, %s25, 1
          %p337 = scmp.lt.s32.totalorder %s27, 0
          %s338 = scalar_select %p337, %s27, 0
          %s339 = sadd.s32 %s338, %s336
          %s340 = smul.addr %s339, 8
          %s341 = scalar_lea.vmem %s2, %s340
        $region52: #{tpu_custom_call.1} parent=39 // pred_fallthru
          _
      $region40: #{tpu_custom_call.1} parent=5 // pred_fallthru
        _
      %p342 = scmp.le.s32.totalorder 1, %s18
      %p343 = scmp.lt.s32.totalorder %s18, 3
      %p344 = pnand %p342, %p343
      %p345 = pneg %p344
      // Predicated region
      $region53: #{tpu_custom_call.1} parent=5 // pred_check
        _
      $region54: #{tpu_custom_call.1} parent=5 // pred_check_branch
        %347 = sbr.rel (%p344) target = $region56
      $region55: #{tpu_custom_call.1} parent=5 // pred_region
        %s348 = ssub.s32 %s18, 1
        %p349 = scmp.lt.s32.totalorder %s28, 1
        %s350 = scalar_select %p349, %s28, 1
        %p351 = scmp.lt.s32.totalorder %s29, 0
        %s352 = scalar_select %p351, %s29, 0
        %s353 = sadd.s32 %s352, %s350
        %s354 = smul.addr %s353, 8
        %s355 = scalar_lea.vmem %s0, %s354
        %p356 = pneg %p65
        %p357 = pneg %p62
        %p358 = scmp.lt.s32.totalorder %s28, 1
        %s359 = scalar_select %p358, %s28, 1
        %p360 = scmp.lt.s32.totalorder %s30, 0
        %s361 = scalar_select %p360, %s30, 0
        %s362 = sadd.s32 %s361, %s359
        %s363 = smul.addr %s362, 8
        %s364 = scalar_lea.vmem %s1, %s363
        %p365 = pneg %p93
        %p366 = pneg %p90
        %p367 = scmp.lt.s32.totalorder %s28, 1
        %s368 = scalar_select %p367, %s28, 1
        %p369 = scmp.lt.s32.totalorder %s30, 0
        %s370 = scalar_select %p369, %s30, 0
        %s371 = sadd.s32 %s370, %s368
        %s372 = smul.addr %s371, 8
        %s373 = scalar_lea.vmem %s2, %s372
        %p374 = pneg %p121
        %p375 = pneg %p118
        %p376 = pneg %p142
        %p377 = pneg %p139
        %p378 = pneg %p163
        %p379 = pneg %p160
        %p380 = pneg %p184
        %p381 = pneg %p181
        %p382 = pneg %p205
        %p383 = pneg %p202
        %p384 = pneg %p226
        %p385 = pneg %p223
        %p386 = pneg %p247
        %p387 = pneg %p244
        %p388 = pneg %p275
        %p389 = pneg %p272
        %s390 = sand.u32 %s262, 1
        %s391 = scalar_lea.sflag [#allocation7], %s390
        %s392 = sand.u32 %s262, 1
        %s393 = smul.addr %s392, 8
        %s394 = scalar_lea.vmem [#allocation6], %s393
        %p395 = scmp.lt.s32.totalorder %s28, 1
        %s396 = scalar_select %p395, %s28, 1
        %p397 = scmp.lt.s32.totalorder %s29, 0
        %s398 = scalar_select %p397, %s29, 0
        %s399 = sadd.s32 %s398, %s396
        %s400 = smul.addr %s399, 8
        %s401 = scalar_lea.vmem %s0, %s400
        %p402 = scmp.lt.s32.totalorder %s28, 1
        %s403 = scalar_select %p402, %s28, 1
        %p404 = scmp.lt.s32.totalorder %s30, 0
        %s405 = scalar_select %p404, %s30, 0
        %s406 = sadd.s32 %s405, %s403
        %s407 = smul.addr %s406, 8
        %s408 = scalar_lea.vmem %s1, %s407
        %p409 = scmp.lt.s32.totalorder %s28, 1
        %s410 = scalar_select %p409, %s28, 1
        %p411 = scmp.lt.s32.totalorder %s30, 0
        %s412 = scalar_select %p411, %s30, 0
        %s413 = sadd.s32 %s412, %s410
        %s414 = smul.addr %s413, 8
        %s415 = scalar_lea.vmem %s2, %s414
        %p416 = scmp.eq.s32.totalorder %s30, 0
        // Predicated region
        $region57: #{tpu_custom_call.1} parent=55 // pred_check
          %p417 = pneg %p416
        $region58: #{tpu_custom_call.1} parent=55 // pred_check_branch
          %419 = sbr.rel (%p417) target = $region60
        $region59: #{tpu_custom_call.1} parent=55 // pred_region
          %v420 = vld [vmem:[%s401] sm:$0xff]
          %v421 = vld [vmem:[%s3] sm:$0xff]
          %v422 = vld [vmem:[%s3 + $0x8] sm:$0xff]
          %v423 = vld [vmem:[%s3 + $0x10] sm:$0xff]
          %v424 = vld [vmem:[%s3 + $0x18] sm:$0xff]
          %v425 = vld [vmem:[%s4] sm:$0x1]
          %v427 = vperm.slane %v425, 0
          %vm429 = vcmask 261120
          %v431 = vsel %vm429, %v420, 0
          %433 = vmatpush.msra.mxu0 0.0
          %434 = vmatpush.msra.mxu0 0.0
          %435 = vmatpush.msra.mxu0 0.0
          %436 = vmatpush.msra.mxu0 0.0
          %437 = vmatpush.msra.mxu0 0.0
          %438 = vmatpush.msra.mxu0 0.0
          %439 = vmatpush.msra.mxu0 0.0
          %440 = vmatpush.msra.mxu0 0.0
          %441 = vmatpush.msra.mxu0 0.0
          %442 = vmatpush.msra.mxu0 0.0
          %443 = vmatpush.msra.mxu0 0.0
          %444 = vmatpush.msra.mxu0 0.0
          %445 = vmatpush.msra.mxu0 %v424
          %446 = vmatpush.msra.mxu0 %v423
          %447 = vmatpush.msra.mxu0 %v422
          %448 = vmatpush.msra.mxu0 %v421
          %449 = vmatmul.f32.gmra.mxu0 %v431
          %v450 = vpop.f32.mrf.mxu0
          %v451 = vadd.f32 %v427, %v450
          %452 = vdwg.mxu0
          %v453 = vmul.f32 %v451, 0.25
          %vm454 = vcmask 130048
          %455 = vst.msk [vmem:[#allocation2] sm:$0xff] %vm454, %v453
          %vm456 = vcmask 7168
          %457 = vst.msk [vmem:[#allocation3] sm:$0xff] %vm456, -inf
          %458 = vst.msk [vmem:[#allocation4] sm:$0xff] %vm456, 0.0
          %459 = vst.msk [vmem:[#allocation5] sm:$0xff] %vm454, 0.0
        $region60: #{tpu_custom_call.1} parent=55 // pred_fallthru
          _
        %v460 = vld [vmem:[%s408] sm:$0xff]
        %v461 = vld [vmem:[%s5] sm:$0xff]
        %v462 = vld [vmem:[%s5 + $0x8] sm:$0xff]
        %v463 = vld [vmem:[%s5 + $0x10] sm:$0xff]
        %v464 = vld [vmem:[%s5 + $0x18] sm:$0xff]
        %v465 = vld [vmem:[%s6] sm:$0x1]
        %v467 = vperm.slane %v465, 0
        %vm469 = vcmask 261120
        %v471 = vsel %vm469, %v460, 0
        %473 = vmatpush.msra.mxu0 0.0
        %474 = vmatpush.msra.mxu0 0.0
        %475 = vmatpush.msra.mxu0 0.0
        %476 = vmatpush.msra.mxu0 0.0
        %477 = vmatpush.msra.mxu0 0.0
        %478 = vmatpush.msra.mxu0 0.0
        %479 = vmatpush.msra.mxu0 0.0
        %480 = vmatpush.msra.mxu0 0.0
        %481 = vmatpush.msra.mxu0 0.0
        %482 = vmatpush.msra.mxu0 0.0
        %483 = vmatpush.msra.mxu0 0.0
        %484 = vmatpush.msra.mxu0 0.0
        %485 = vmatpush.msra.mxu0 %v464
        %486 = vmatpush.msra.mxu0 %v463
        %487 = vmatpush.msra.mxu0 %v462
        %488 = vmatpush.msra.mxu0 %v461
        %489 = vmatmul.f32.gmra.mxu0 %v471
        %v490 = vpop.f32.mrf.mxu0
        %v491 = vadd.f32 %v467, %v490
        %492 = vdwg.mxu0
        %v493 = vld [vmem:[%s415] sm:$0xff]
        %v494 = vld [vmem:[%s7] sm:$0xff]
        %v495 = vld [vmem:[%s7 + $0x8] sm:$0xff]
        %v496 = vld [vmem:[%s7 + $0x10] sm:$0xff]
        %v497 = vld [vmem:[%s7 + $0x18] sm:$0xff]
        %v498 = vld [vmem:[%s8] sm:$0x1]
        %v500 = vperm.slane %v498, 0
        %v503 = vsel %vm469, %v493, 0
        %505 = vmatpush.msra.mxu0 0.0
        %506 = vmatpush.msra.mxu0 0.0
        %507 = vmatpush.msra.mxu0 0.0
        %508 = vmatpush.msra.mxu0 0.0
        %509 = vmatpush.msra.mxu0 0.0
        %510 = vmatpush.msra.mxu0 0.0
        %511 = vmatpush.msra.mxu0 0.0
        %512 = vmatpush.msra.mxu0 0.0
        %513 = vmatpush.msra.mxu0 0.0
        %514 = vmatpush.msra.mxu0 0.0
        %515 = vmatpush.msra.mxu0 0.0
        %516 = vmatpush.msra.mxu0 0.0
        %517 = vmatpush.msra.mxu0 %v497
        %518 = vmatpush.msra.mxu0 %v496
        %519 = vmatpush.msra.mxu0 %v495
        %520 = vmatpush.msra.mxu0 %v494
        %521 = vmatmul.f32.gmra.mxu0 %v503
        %v522 = vpop.f32.mrf.mxu0
        %v523 = vadd.f32 %v500, %v522
        %524 = vdwg.mxu0
        %v525 = vld [vmem:[#allocation2] sm:$0xff]
        %vm526 = vcmask 130048
        %v528 = vsel %vm526, %v525, 0
        %v531 = vsel %vm526, %v491, 0
        %533 = vmatpush.xpose.msra.mxu0 0.0
        %534 = vmatpush.xpose.msra.mxu0 0.0
        %535 = vmatpush.xpose.msra.mxu0 0.0
        %536 = vmatpush.xpose.msra.mxu0 0.0
        %537 = vmatpush.xpose.msra.mxu0 0.0
        %538 = vmatpush.xpose.msra.mxu0 0.0
        %539 = vmatpush.xpose.msra.mxu0 0.0
        %540 = vmatpush.xpose.msra.mxu0 0.0
        %541 = vmatpush.xpose.msra.mxu0 0.0
        %542 = vmatpush.xpose.msra.mxu0 0.0
        %543 = vmatpush.xpose.msra.mxu0 0.0
        %544 = vmatpush.xpose.msra.mxu0 0.0
        %545 = vmatpush.xpose.msra.mxu0 0.0
        %546 = vmatpush.xpose.msra.mxu0 0.0
        %547 = vmatpush.xpose.msra.mxu0 0.0
        %548 = vmatpush.xpose.msra.mxu0 %v531
        %549 = vmatmul.f32.gmra.mxu0 %v528
        %v550 = vpop.f32.mrf.mxu0
        %v551 = vadd.f32 0.0, %v550
        %552 = vdwg.mxu0
        %v553 = vld [vmem:[#allocation3] sm:$0xff]
        %vm554 = vcmask 64512
        %v555 = vsel %vm554, %v551, -inf
        %556 = vmax.xlane.f32.xlu0 %v555
        %v557 = vpop.xlane.xlu0 %556
        %v558 = vmax.f32 %v553, %v557
        %v559 = vsub.f32 %v553, %v558
        %v560 = vmul.f32 %v559, 1.442695
        %v561 = vpow.pop %v560
        %563 = vset.pattern.permute.xlu0 0
        %564 = vperm.xlu0 %563, %v558
        %v565 = vpop.permute.xlu0 %564
        %v567 = vsub.f32 %v551, %v565
        %v568 = vmul.f32 %v567, 1.442695
        %v569 = vpow.pop %v568
        %v570 = vld [vmem:[#allocation4] sm:$0xff]
        %v571 = vmul.f32 %v561, %v570
        %v572 = vsel %vm554, %v569, 0.0
        %573 = vadd.xlane.f32.xlu0 %v572
        %v574 = vpop.xlane.xlu0 %573
        %v575 = vadd.f32 %v571, %v574
        %vm576 = vcmask 7168
        %577 = vst.msk [vmem:[#allocation4] sm:$0xff] %vm576, %v575
        %v578 = vld [vmem:[#allocation5] sm:$0xff]
        %580 = vset.pattern.permute.xlu0 0
        %581 = vperm.xlu0 %580, %v561
        %v582 = vpop.permute.xlu0 %581
        %v584 = vmul.f32 %v582, %v578
        %v586 = vsel %vm554, %v569, 0
        %588 = vmatpush.msra.mxu0 0.0
        %589 = vmatpush.msra.mxu0 0.0
        %590 = vmatpush.msra.mxu0 0.0
        %591 = vmatpush.msra.mxu0 0.0
        %592 = vmatpush.msra.mxu0 0.0
        %593 = vmatpush.msra.mxu0 0.0
        %594 = vmatpush.msra.mxu0 0.0
        %595 = vmatpush.msra.mxu0 0.0
        %596 = vmatpush.msra.mxu0 0.0
        %597 = vmatpush.msra.mxu0 0.0
        %598 = vmatpush.msra.mxu0 0.0
        %599 = vmatpush.msra.mxu0 0.0
        %600 = vmatpush.msra.mxu0 0.0
        %601 = vmatpush.msra.mxu0 0.0
        %602 = vmatpush.msra.mxu0 0.0
        %603 = vmatpush.msra.mxu0 %v523
        %604 = vmatmul.f32.gmra.mxu0 %v586
        %v605 = vpop.f32.mrf.mxu0
        %v606 = vadd.f32 0.0, %v605
        %607 = vdwg.mxu0
        %v608 = vadd.f32 %v584, %v606
        %609 = vst.msk [vmem:[#allocation5] sm:$0xff] %vm526, %v608
        %610 = vst.msk [vmem:[#allocation3] sm:$0xff] %vm576, %v558
        // Predicated region
        $region61: #{tpu_custom_call.1} parent=55 // pred_check
          %p611 = pneg %p416
        $region62: #{tpu_custom_call.1} parent=55 // pred_check_branch
          %613 = sbr.rel (%p611) target = $region64
        $region63: #{tpu_custom_call.1} parent=55 // pred_region
          %v614 = vld [vmem:[#allocation4] sm:$0xff]
          %v615 = vrcp.pop %v614
          %v616 = vld [vmem:[#allocation5] sm:$0xff]
          %618 = vset.pattern.permute.xlu0 0
          %619 = vperm.xlu0 %618, %v615
          %v620 = vpop.permute.xlu0 %619
          %v622 = vmul.f32 %v616, %v620
          %623 = vst.msk [vmem:[%s394] sm:$0xff] %vm526, %v622
        $region64: #{tpu_custom_call.1} parent=55 // pred_fallthru
          _
        %s624 = sand.u32 %s262, 1
        %s625 = scalar_lea.sflag [#allocation7], %s624
        %s626 = sand.u32 %s262, 1
        %s627 = smul.addr %s626, 8
        %s628 = scalar_lea.vmem [#allocation6], %s627
        // Predicated region
        $region65: #{tpu_custom_call.1} parent=55 // pred_check
          %p629 = pneg %p272
        $region66: #{tpu_custom_call.1} parent=55 // pred_check_branch
          %631 = sbr.rel (%p629) target = $region68
        $region67: #{tpu_custom_call.1} parent=55 // pred_region
          %633 = vsyncadd %s625, 0
          %s634 = sadd.s32 %s29, %s28
          %s635 = smul.addr %s634, 8
          %s636 = scalar_lea.hbm %s9, %s635
          %s638 = sshll.u32 %s628, 4
          %s639 = int_to_ptr.vmem [resolvable:$true] %s638
          %s640 = sshll.u32 %s636, 4
          %s641 = int_to_ptr.hbm [resolvable:$true] %s640
          %643 = dma.vmem_to_hbm [thread:$0]  %s639, 128, %s641, %s625
        $region68: #{tpu_custom_call.1} parent=55 // pred_fallthru
          _
      $region56: #{tpu_custom_call.1} parent=5 // pred_fallthru
        _
      %p644 = scmp.le.s32.totalorder 2, %s18
      // Predicated region
      $region69: #{tpu_custom_call.1} parent=5 // pred_check
        %p645 = pneg %p644
      $region70: #{tpu_custom_call.1} parent=5 // pred_check_branch
        %647 = sbr.rel (%p645) target = $region72
      $region71: #{tpu_custom_call.1} parent=5 // pred_region
        %s648 = ssub.s32 %s18, 2
        // Predicated region
        $region73: #{tpu_custom_call.1} parent=71 // pred_check
          %p649 = pneg %p278
        $region74: #{tpu_custom_call.1} parent=71 // pred_check_branch
          %651 = sbr.rel (%p649) target = $region76
        $region75: #{tpu_custom_call.1} parent=71 // pred_region
          %s652 = sand.u32 %s263, 1
          %s653 = scalar_lea.sflag [#allocation7], %s652
          %s654 = sand.u32 %s263, 1
          %s655 = smul.addr %s654, 8
          %s656 = scalar_lea.vmem [#allocation6], %s655
          %658 = dma.done %s653, 128
        $region76: #{tpu_custom_call.1} parent=71 // pred_fallthru
          _
      $region72: #{tpu_custom_call.1} parent=5 // pred_fallthru
        _
    $region6: #{tpu_custom_call.1} parent=1 // loop_footer
      %s22 = sadd.s32 1, %s18
    $region7: #{tpu_custom_call.1} parent=1 // loop_footer_branch
      %17 = sbr.rel target = $region3
    $region8: #{tpu_custom_call.1} parent=1 // loop_exit
      _
    %659 = vsyncpa [#allocation7], 1
    %s660 = scalar_lea.sflag [#allocation7], 1
    %661 = vsyncpa %s660, 1

</llo_original>
